<compile_context>
chip_gen: v7x
topology: tpu7x:2x2x1
jax: 0.10.0
libtpu: 0.0.40
codegen_flags: <defaults>
</compile_context>

<pallas_src>
import jax
import jax.numpy as jnp
import numpy as np
from jax.experimental import pallas as pl
from jax.experimental.pallas import tpu as pltpu

CONV_CIN = 20     # Conv1d in_channels  (fixed by the module)
CONV_COUT = 2     # Conv1d out_channels (fixed by the module)


def _encoder_kernel(x_ref, wt_ref, cw_ref, bias_ref, o_ref):
    # x_ref    : (BT*C, F0)        flattened (batch-tile, channel) rows
    # wt_ref   : (F0, FL)          folded Linear chain  W1^T W2^T ... Wn^T
    # cw_ref   : (BT*COUT, BT*C)   block-diagonal k=1 conv channel-mixing matrix
    # bias_ref : (BT*COUT, FL)     folded bias (linear-chain bias through conv + conv bias)
    # o_ref    : (BT*COUT, FL)
    h = jnp.dot(x_ref[...], wt_ref[...], preferred_element_type=jnp.float32)
    out = jnp.dot(cw_ref[...], h, preferred_element_type=jnp.float32) + bias_ref[...]
    o_ref[...] = out.astype(o_ref.dtype)


def _pick_batch_tile(B, C, COUT, target_rows=256):
    """Batch elements per grid step: tile rows near MXU height, (8, .)-aligned."""
    max_bt = max(1, min(B, target_rows // C))
    for bt in range(max_bt, 0, -1):
        if B % bt == 0 and (bt == B or ((bt * C) % 8 == 0 and (bt * COUT) % 8 == 0)):
            return bt
    return B  # single full-batch tile (block == full array, always legal)


def encoder_forward(x, params):
    """x: (B, 20, F0) float32  ->  (B, 2, F_last) float32."""
    *linears, (cw, cb) = params
    B, C, F0 = x.shape
    assert C == CONV_CIN

    # ---- one-time algebraic folding of the activation-free Linear chain ----
    w_total = linears[0][0].T                      # (F0, F1)
    b_total = linears[0][1]                        # (F1,)
    for w, b in linears[1:]:
        w_total = w_total @ w.T                    # (F0, Fi)
        b_total = b_total @ w.T + b                # (Fi,)
    FL = w_total.shape[1]

    cw2 = cw[:, :, 0]                              # (COUT, C)  k=1 conv kernel
    BT = _pick_batch_tile(B, C, CONV_COUT)
    n_tiles = B // BT
    rows_in, rows_out = BT * C, BT * CONV_COUT

    # block-diagonal conv mixing matrix for one batch tile
    cw_big = jnp.kron(jnp.eye(BT, dtype=x.dtype), cw2)                 # (BT*COUT, BT*C)
    # folded bias: conv applied to the (row-constant) linear-chain bias + conv bias
    per_b_bias = cw2.sum(axis=1)[:, None] * b_total[None, :] + cb[:, None]  # (COUT, FL)
    bias_tile = jnp.tile(per_b_bias, (BT, 1))                          # (BT*COUT, FL)

    x_flat = x.reshape(B * C, F0)

    # explicit scoped-VMEM sizing (double-buffered x tile + resident folded weights)
    vmem_bytes = 4 * (2 * rows_in * F0 + 2 * F0 * FL + 2 * rows_out * rows_in
                      + 2 * rows_out * FL + 2 * rows_out * FL + rows_in * FL)
    vmem_limit = int(min(max(2 * vmem_bytes, 16 << 20), 32 << 20))

    def full_block(a):
        return pl.BlockSpec(a.shape, lambda i: (0, 0))

    out_flat = pl.pallas_call(
        _encoder_kernel,
        out_shape=jax.ShapeDtypeStruct((B * CONV_COUT, FL), jnp.float32),
        grid=(n_tiles,),
        in_specs=[
            pl.BlockSpec((rows_in, F0), lambda i: (i, 0)),   # x rows for this batch tile
            full_block(w_total),
            full_block(cw_big),
            full_block(bias_tile),
        ],
        out_specs=pl.BlockSpec((rows_out, FL), lambda i: (i, 0)),
        compiler_params=pltpu.CompilerParams(
            dimension_semantics=("parallel",),
            vmem_limit_bytes=vmem_limit),
    )(x_flat, w_total, cw_big, bias_tile)

    return out_flat.reshape(B, CONV_COUT, FL)


def init_params(key, arch):
    """Deterministic init mimicking PyTorch defaults (uniform(-1/sqrt(fan_in), ...))."""
    params = []
    keys = jax.random.split(key, len(arch) - 1 + 1)
    for i, (fin, fout) in enumerate(zip(arch[:-1], arch[1:])):
        kw, kb = jax.random.split(keys[i])
        bound = 1.0 / np.sqrt(fin)
        w = jax.random.uniform(kw, (fout, fin), jnp.float32, -bound, bound)
        b = jax.random.uniform(kb, (fout,), jnp.float32, -bound, bound)
        params.append((w, b))
    kw, kb = jax.random.split(keys[-1])
    bound = 1.0 / np.sqrt(CONV_CIN * 1)
    cw = jax.random.uniform(kw, (CONV_COUT, CONV_CIN, 1), jnp.float32, -bound, bound)
    cb = jax.random.uniform(kb, (CONV_COUT,), jnp.float32, -bound, bound)
    params.append((cw, cb))
    return params


def reference_forward(x, params):
    """Pure-JAX reference matching the PyTorch forward (un-folded chain)."""
    *linears, (cw, cb) = params
    h = x
    for w, b in linears:
        h = jnp.einsum('bcf,gf->bcg', h, w) + b            # Linear on last axis
    return jnp.einsum('oc,bcl->bol', cw[:, :, 0], h) + cb[None, :, None]


if __name__ == "__main__":
    # Small shapes consistent with the module structure (4 linears + Conv1d(20,2,1,1)).
    arch_small = [64, 48, 32, 16, 1]
    B = 2
    key = jax.random.PRNGKey(0)
    kx, kp = jax.random.split(key)

    x = jax.random.normal(kx, (B, CONV_CIN, arch_small[0]), jnp.float32)
    params = init_params(kp, arch_small)

    out = encoder_forward(x, params)
    out = jax.block_until_ready(out)

    ref = reference_forward(x, params)
    assert out.shape == (B, CONV_COUT, arch_small[-1])
    np.testing.assert_allclose(np.asarray(out), np.asarray(ref), rtol=1e-3, atol=1e-4)

    print("KERNEL_OK")
</pallas_src>

<mosaic_0001>
module attributes {stable_mosaic.version = 11 : i64} {
  func.func @_encoder_kernel(%arg0: i32, %arg1: memref<40x64xf32, #tpu.memory_space<vmem>>, %arg2: memref<64x1xf32, #tpu.memory_space<vmem>>, %arg3: memref<4x40xf32, #tpu.memory_space<vmem>>, %arg4: memref<4x1xf32, #tpu.memory_space<vmem>>, %arg5: memref<4x1xf32, #tpu.memory_space<vmem>>) attributes {dimension_semantics = [#tpu.dimension_semantics<parallel>], iteration_bounds = array<i64: 1>, scalar_prefetch = 0 : i64, scratch_operands = 0 : i64, tpu.core_type = #tpu.core_type<tc>, window_params = [{transform_indices = @transform_0, window_bounds = array<i64: 40, 64>}, {pipeline_mode = #tpu.pipeline_mode<synchronous>, transform_indices = @transform_1, window_bounds = array<i64: 64, 1>}, {pipeline_mode = #tpu.pipeline_mode<synchronous>, transform_indices = @transform_2, window_bounds = array<i64: 4, 40>}, {pipeline_mode = #tpu.pipeline_mode<synchronous>, transform_indices = @transform_3, window_bounds = array<i64: 4, 1>}, {transform_indices = @transform_4, window_bounds = array<i64: 4, 1>}]} {
    %c0 = arith.constant 0 : index
    %c0_0 = arith.constant 0 : index
    %0 = vector.load %arg1[%c0, %c0_0] : memref<40x64xf32, #tpu.memory_space<vmem>>, vector<40x64xf32>
    %c0_1 = arith.constant 0 : index
    %c0_2 = arith.constant 0 : index
    %1 = vector.load %arg2[%c0_1, %c0_2] : memref<64x1xf32, #tpu.memory_space<vmem>>, vector<64x1xf32>
    %cst = arith.constant dense<0.000000e+00> : vector<40x1xf32>
    %2 = tpu.matmul %0, %1, %cst {dimension_numbers = #tpu.dot_dimension_numbers<[1], [0], [0], [1], [0, 0, 1, 1], [], []>} : vector<40x64xf32>, vector<64x1xf32>, vector<40x1xf32> -> vector<40x1xf32>
    %c0_3 = arith.constant 0 : index
    %c0_4 = arith.constant 0 : index
    %3 = vector.load %arg3[%c0_3, %c0_4] : memref<4x40xf32, #tpu.memory_space<vmem>>, vector<4x40xf32>
    %cst_5 = arith.constant dense<0.000000e+00> : vector<4x1xf32>
    %4 = tpu.matmul %3, %2, %cst_5 {dimension_numbers = #tpu.dot_dimension_numbers<[1], [0], [0], [1], [0, 0, 1, 1], [], []>} : vector<4x40xf32>, vector<40x1xf32>, vector<4x1xf32> -> vector<4x1xf32>
    %c0_6 = arith.constant 0 : index
    %c0_7 = arith.constant 0 : index
    %5 = vector.load %arg4[%c0_6, %c0_7] : memref<4x1xf32, #tpu.memory_space<vmem>>, vector<4x1xf32>
    %6 = arith.addf %4, %5 : vector<4x1xf32>
    %c0_8 = arith.constant 0 : index
    %c0_9 = arith.constant 0 : index
    %7 = vector.load %arg5[%c0_8, %c0_9] : memref<4x1xf32, #tpu.memory_space<vmem>>, vector<4x1xf32>
    tpu.vector_store %arg5[%c0_8, %c0_9], %6 {strides = array<i32>} : memref<4x1xf32, #tpu.memory_space<vmem>>, vector<4x1xf32>,
    return
  }
  func.func @transform_0(%arg0: i32) -> (i32, i32) {
    %c0_i32 = arith.constant 0 : i32
    %c0_i32_0 = arith.constant 0 : i32
    return %arg0, %c0_i32 : i32, i32
  }
  func.func @transform_1(%arg0: i32) -> (i32, i32) {
    %c0_i32 = arith.constant 0 : i32
    %c0_i32_0 = arith.constant 0 : i32
    %c0_i32_1 = arith.constant 0 : i32
    return %c0_i32, %c0_i32_0 : i32, i32
  }
  func.func @transform_2(%arg0: i32) -> (i32, i32) {
    %c0_i32 = arith.constant 0 : i32
    %c0_i32_0 = arith.constant 0 : i32
    %c0_i32_1 = arith.constant 0 : i32
    return %c0_i32, %c0_i32_0 : i32, i32
  }
  func.func @transform_3(%arg0: i32) -> (i32, i32) {
    %c0_i32 = arith.constant 0 : i32
    %c0_i32_0 = arith.constant 0 : i32
    %c0_i32_1 = arith.constant 0 : i32
    return %c0_i32, %c0_i32_0 : i32, i32
  }
  func.func @transform_4(%arg0: i32) -> (i32, i32) {
    %c0_i32 = arith.constant 0 : i32
    %c0_i32_0 = arith.constant 0 : i32
    return %arg0, %c0_i32 : i32, i32
  }
}

</mosaic_0001>

<llo_original>
// kernel: tpu_custom_call.1
$region0: #{tpu_custom_call.1}
  #allocation0 [shape = 'u32[]', space=smem, size = 0x4, offset = 0x4, fixed_abs, tag = 'smem constant byte address 0x4 - core index']
  #allocation1 [shape = 'u32[144,128]{1,0:T(1,128)}', space=vmem, size = 0x12000, scoped, tag = 'internal scratch']
  %s0 = inlined_call_operand.vmem [shape: f32[40,64], index: 0, kind: input, shape index: {}]
  %s1 = inlined_call_operand.vmem [shape: f32[64,1], index: 1, kind: input, shape index: {}]
  %s2 = inlined_call_operand.vmem [shape: f32[4,40], index: 2, kind: input, shape index: {}]
  %s3 = inlined_call_operand.vmem [shape: f32[4,1], index: 3, kind: input, shape index: {}]
  %s4 = inlined_call_operand.vmem [shape: f32[4,1], index: 4, kind: output, shape index: {}]
  %s5 = sld [smem:[#allocation0]]
  $region26: #{tpu_custom_call.1} parent=0
    _
  %s7 = ssub.s32 1, %s5
  %s8 = scalar_select 0, %s7, %s5
  // Predicated region
  $region2: #{tpu_custom_call.1} parent=0 // pred_check
    _
  $region3: #{tpu_custom_call.1} parent=0 // pred_check_branch
    %10 = sbr.rel (0) target = $region5
  $region4: #{tpu_custom_call.1} parent=0 // pred_region
    _
  $region5: #{tpu_custom_call.1} parent=0 // pred_fallthru
    _
  // Predicated region
  $region6: #{tpu_custom_call.1} parent=0 // pred_check
    _
  $region7: #{tpu_custom_call.1} parent=0 // pred_check_branch
    %12 = sbr.rel (0) target = $region9
  $region8: #{tpu_custom_call.1} parent=0 // pred_region
    _
  $region9: #{tpu_custom_call.1} parent=0 // pred_fallthru
    _
  // Predicated region
  $region10: #{tpu_custom_call.1} parent=0 // pred_check
    _
  $region11: #{tpu_custom_call.1} parent=0 // pred_check_branch
    %14 = sbr.rel (0) target = $region13
  $region12: #{tpu_custom_call.1} parent=0 // pred_region
    _
  $region13: #{tpu_custom_call.1} parent=0 // pred_fallthru
    _
  // Predicated region
  $region14: #{tpu_custom_call.1} parent=0 // pred_check
    _
  $region15: #{tpu_custom_call.1} parent=0 // pred_check_branch
    %16 = sbr.rel (0) target = $region17
  $region16: #{tpu_custom_call.1} parent=0 // pred_region
    _
  $region17: #{tpu_custom_call.1} parent=0 // pred_fallthru
    _
  %v17 = vld [vmem:[%s0] sm:$0xff]
  %v18 = vld [vmem:[%s0 + $0x8] sm:$0xff]
  %v19 = vld [vmem:[%s0 + $0x10] sm:$0xff]
  %v20 = vld [vmem:[%s0 + $0x18] sm:$0xff]
  %v21 = vld [vmem:[%s0 + $0x20] sm:$0xff]
  %v22 = vld [vmem:[%s1] sm:$0xff]
  %v23 = vld [vmem:[%s1 + $0x8] sm:$0xff]
  %v24 = vld [vmem:[%s1 + $0x10] sm:$0xff]
  %v25 = vld [vmem:[%s1 + $0x18] sm:$0xff]
  %v26 = vld [vmem:[%s1 + $0x20] sm:$0xff]
  %v27 = vld [vmem:[%s1 + $0x28] sm:$0xff]
  %v28 = vld [vmem:[%s1 + $0x30] sm:$0xff]
  %v29 = vld [vmem:[%s1 + $0x38] sm:$0xff]
  %vm30 = vcmask 523264
  %v32 = vsel %vm30, %v17, 0
  %v35 = vsel %vm30, %v18, 0
  %v38 = vsel %vm30, %v19, 0
  %v41 = vsel %vm30, %v20, 0
  %v44 = vsel %vm30, %v21, 0
  %46 = vmatprep.subr.mxu0 0.0
  %47 = vmatpush1.msra.mxu0 %v22
  %48 = vmatprep.subr.mxu0 0.0
  %49 = vmatpush1.msra.mxu0 %v23
  %50 = vmatprep.subr.mxu0 0.0
  %51 = vmatpush1.msra.mxu0 %v24
  %52 = vmatprep.subr.mxu0 0.0
  %53 = vmatpush1.msra.mxu0 %v25
  %54 = vmatprep.subr.mxu0 0.0
  %55 = vmatpush1.msra.mxu0 %v26
  %56 = vmatprep.subr.mxu0 0.0
  %57 = vmatpush1.msra.mxu0 %v27
  %58 = vmatprep.subr.mxu0 0.0
  %59 = vmatpush1.msra.mxu0 %v28
  %60 = vmatprep.subr.mxu0 0.0
  %61 = vmatpush1.msra.mxu0 %v29
  %62 = vmatprep.subr.mxu0 0.0
  %63 = vmatpush1.msra.mxu0 0.0
  %64 = vmatprep.subr.mxu0 0.0
  %65 = vmatpush1.msra.mxu0 0.0
  %66 = vmatprep.subr.mxu0 0.0
  %67 = vmatpush1.msra.mxu0 0.0
  %68 = vmatprep.subr.mxu0 0.0
  %69 = vmatpush1.msra.mxu0 0.0
  %70 = vmatprep.subr.mxu0 0.0
  %71 = vmatpush1.msra.mxu0 0.0
  %72 = vmatprep.subr.mxu0 0.0
  %73 = vmatpush1.msra.mxu0 0.0
  %74 = vmatprep.subr.mxu0 0.0
  %75 = vmatpush1.msra.mxu0 0.0
  %76 = vmatprep.subr.mxu0 0.0
  %77 = vmatpush1.msra.mxu0 0.0
  %78 = vmatprep.subr.mxu0 0.0
  %79 = vmatpush1.msra.mxu0 0.0
  %80 = vmatprep.subr.mxu0 0.0
  %81 = vmatpush1.msra.mxu0 0.0
  %82 = vmatprep.subr.mxu0 0.0
  %83 = vmatpush1.msra.mxu0 0.0
  %84 = vmatprep.subr.mxu0 0.0
  %85 = vmatpush1.msra.mxu0 0.0
  %86 = vmatprep.subr.mxu0 0.0
  %87 = vmatpush1.msra.mxu0 0.0
  %88 = vmatprep.subr.mxu0 0.0
  %89 = vmatpush1.msra.mxu0 0.0
  %90 = vmatprep.subr.mxu0 0.0
  %91 = vmatpush1.msra.mxu0 0.0
  %92 = vmatprep.subr.mxu0 0.0
  %93 = vmatpush1.msra.mxu0 0.0
  %94 = vmatprep.subr.mxu0 0.0
  %95 = vmatpush1.msra.mxu0 0.0
  %96 = vmatprep.subr.mxu0 0.0
  %97 = vmatpush1.msra.mxu0 0.0
  %98 = vmatprep.subr.mxu0 0.0
  %99 = vmatpush1.msra.mxu0 0.0
  %100 = vmatprep.subr.mxu0 0.0
  %101 = vmatpush1.msra.mxu0 0.0
  %102 = vmatprep.subr.mxu0 0.0
  %103 = vmatpush1.msra.mxu0 0.0
  %104 = vmatprep.subr.mxu0 0.0
  %105 = vmatpush1.msra.mxu0 0.0
  %106 = vmatprep.subr.mxu0 0.0
  %107 = vmatpush1.msra.mxu0 0.0
  %108 = vmatprep.subr.mxu0 0.0
  %109 = vmatpush1.msra.mxu0 0.0
  %110 = vmatprep.mubr.f32.mxu0 0.0
  %111 = vmatmul.mubr.f32.gmra.mrb[0].mxu0 %v32
  %v112 = vpop.f32.mrb[0].mxu0
  %v113 = vadd.f32 0.0, %v112
  %v114 = vpop.f32.mrb[0].mxu0
  %115 = vmatprep.mubr.f32.mxu0 0.0
  %116 = vmatmul.mubr.f32.gmra.mrb[0].mxu0 %v35
  %v117 = vpop.f32.mrb[0].mxu0
  %v118 = vadd.f32 0.0, %v117
  %v119 = vpop.f32.mrb[0].mxu0
  %120 = vmatprep.mubr.f32.mxu0 0.0
  %121 = vmatmul.mubr.f32.gmra.mrb[0].mxu0 %v38
  %v122 = vpop.f32.mrb[0].mxu0
  %v123 = vadd.f32 0.0, %v122
  %v124 = vpop.f32.mrb[0].mxu0
  %125 = vmatprep.mubr.f32.mxu0 0.0
  %126 = vmatmul.mubr.f32.gmra.mrb[0].mxu0 %v41
  %v127 = vpop.f32.mrb[0].mxu0
  %v128 = vadd.f32 0.0, %v127
  %v129 = vpop.f32.mrb[0].mxu0
  %130 = vmatprep.mubr.f32.mxu0 0.0
  %131 = vmatmul.mubr.f32.gmra.mrb[0].mxu0 %v44
  %v132 = vpop.f32.mrb[0].mxu0
  %v133 = vadd.f32 0.0, %v132
  %v134 = vpop.f32.mrb[0].mxu0
  %135 = vdwg.mxu0
  %v136 = vld [vmem:[%s2] sm:$0xf]
  %v137 = vld [vmem:[%s3] sm:$0xf]
  %vm138 = vcmask 326656
  %v140 = vsel %vm138, %v136, 0
  %142 = vmatprep.subr.mxu0 0.0
  %143 = vmatpush1.msra.mxu0 %v113
  %144 = vmatprep.subr.mxu0 0.0
  %145 = vmatpush1.msra.mxu0 %v118
  %146 = vmatprep.subr.mxu0 0.0
  %147 = vmatpush1.msra.mxu0 %v123
  %148 = vmatprep.subr.mxu0 0.0
  %149 = vmatpush1.msra.mxu0 %v128
  %150 = vmatprep.subr.mxu0 0.0
  %151 = vmatpush1.msra.mxu0 %v133
  %152 = vmatprep.subr.mxu0 0.0
  %153 = vmatpush1.msra.mxu0 0.0
  %154 = vmatprep.subr.mxu0 0.0
  %155 = vmatpush1.msra.mxu0 0.0
  %156 = vmatprep.subr.mxu0 0.0
  %157 = vmatpush1.msra.mxu0 0.0
  %158 = vmatprep.subr.mxu0 0.0
  %159 = vmatpush1.msra.mxu0 0.0
  %160 = vmatprep.subr.mxu0 0.0
  %161 = vmatpush1.msra.mxu0 0.0
  %162 = vmatprep.subr.mxu0 0.0
  %163 = vmatpush1.msra.mxu0 0.0
  %164 = vmatprep.subr.mxu0 0.0
  %165 = vmatpush1.msra.mxu0 0.0
  %166 = vmatprep.subr.mxu0 0.0
  %167 = vmatpush1.msra.mxu0 0.0
  %168 = vmatprep.subr.mxu0 0.0
  %169 = vmatpush1.msra.mxu0 0.0
  %170 = vmatprep.subr.mxu0 0.0
  %171 = vmatpush1.msra.mxu0 0.0
  %172 = vmatprep.subr.mxu0 0.0
  %173 = vmatpush1.msra.mxu0 0.0
  %174 = vmatprep.subr.mxu0 0.0
  %175 = vmatpush1.msra.mxu0 0.0
  %176 = vmatprep.subr.mxu0 0.0
  %177 = vmatpush1.msra.mxu0 0.0
  %178 = vmatprep.subr.mxu0 0.0
  %179 = vmatpush1.msra.mxu0 0.0
  %180 = vmatprep.subr.mxu0 0.0
  %181 = vmatpush1.msra.mxu0 0.0
  %182 = vmatprep.subr.mxu0 0.0
  %183 = vmatpush1.msra.mxu0 0.0
  %184 = vmatprep.subr.mxu0 0.0
  %185 = vmatpush1.msra.mxu0 0.0
  %186 = vmatprep.subr.mxu0 0.0
  %187 = vmatpush1.msra.mxu0 0.0
  %188 = vmatprep.subr.mxu0 0.0
  %189 = vmatpush1.msra.mxu0 0.0
  %190 = vmatprep.subr.mxu0 0.0
  %191 = vmatpush1.msra.mxu0 0.0
  %192 = vmatprep.subr.mxu0 0.0
  %193 = vmatpush1.msra.mxu0 0.0
  %194 = vmatprep.subr.mxu0 0.0
  %195 = vmatpush1.msra.mxu0 0.0
  %196 = vmatprep.subr.mxu0 0.0
  %197 = vmatpush1.msra.mxu0 0.0
  %198 = vmatprep.subr.mxu0 0.0
  %199 = vmatpush1.msra.mxu0 0.0
  %200 = vmatprep.subr.mxu0 0.0
  %201 = vmatpush1.msra.mxu0 0.0
  %202 = vmatprep.subr.mxu0 0.0
  %203 = vmatpush1.msra.mxu0 0.0
  %204 = vmatprep.subr.mxu0 0.0
  %205 = vmatpush1.msra.mxu0 0.0
  %206 = vmatprep.mubr.f32.mxu0 0.0
  %207 = vmatmul.mubr.f32.gmra.mrb[0].mxu0 %v140
  %v208 = vpop.f32.mrb[0].mxu0
  %v209 = vadd.f32 %v137, %v208
  %v210 = vpop.f32.mrb[0].mxu0
  %211 = vdwg.mxu0
  %vm212 = vcmask 3072
  %213 = vst.msk [vmem:[%s4] sm:$0xf] %vm212, %v209
  // Predicated region
  $region18: #{tpu_custom_call.1} parent=0 // pred_check
    _
  $region19: #{tpu_custom_call.1} parent=0 // pred_check_branch
    %215 = sbr.rel (0) target = $region21
  $region20: #{tpu_custom_call.1} parent=0 // pred_region
    _
  $region21: #{tpu_custom_call.1} parent=0 // pred_fallthru
    _
  // Predicated region
  $region22: #{tpu_custom_call.1} parent=0 // pred_check
    _
  $region23: #{tpu_custom_call.1} parent=0 // pred_check_branch
    %217 = sbr.rel (0) target = $region25
  $region24: #{tpu_custom_call.1} parent=0 // pred_region
    _
  $region25: #{tpu_custom_call.1} parent=0 // pred_fallthru
    _

</llo_original>
